<compile_context>
chip_gen: v7x
topology: tpu7x:2x2x1
jax: 0.10.0
libtpu: 0.0.40
codegen_flags: <defaults>
</compile_context>

<pallas_src>
import jax
import jax.numpy as jnp
from jax.experimental import pallas as pl
from jax.experimental.pallas import tpu as pltpu


def _bn_kernel(sb_ref, x_ref, o_ref):
    # sb_ref: (block_rows, 2) float32; col 0 = scale (1/std), col 1 = bias
    #         (-mean/std) for the rows of this tile.
    # x_ref / o_ref: (block_rows, block_cols) activation tiles.
    sb = sb_ref[...]
    scale = sb[:, 0:1]
    bias = sb[:, 1:2]
    x = x_ref[...].astype(jnp.float32)          # f32 FMA; free under the DMA
    o_ref[...] = (x * scale + bias).astype(o_ref.dtype)


def _is_v7x():
    try:
        kind = jax.devices()[0].device_kind.lower()
    except Exception:
        return False
    return "v7" in kind


def batch_normalize(x, mean, std, *, donate_input=False):
    """(x - mean[None,:,None,None]) / std[None,:,None,None] for NCHW x."""
    N, C, H, W = x.shape
    assert mean.shape == (C,) and std.shape == (C,)

    rows, cols = N * C, H * W
    itemsize = jnp.dtype(x.dtype).itemsize

    is_v7x = _is_v7x()
    # Pure HBM streaming: the ~0.35us per-grid-step overhead is worth more
    # bytes at v7x's ~3.2 TB/s, so grow the tile there.  2 MiB tiles already
    # sit near the roofline on v5e/v6e and stay under their scoped-VMEM
    # defaults without any explicit limit.
    tile_bytes = (4 << 20) if is_v7x else (2 << 20)

    # ---- column (lane) block: keep non-edge blocks multiples of 128 ----
    target_cols = max(128, (tile_bytes // (256 * itemsize)) // 128 * 128)
    if cols <= target_cols:
        bc = cols                                   # full minor dim (legal)
    elif cols % 128 == 0:
        # roughly-equal, lane-dense column blocks near the target size
        bc = max(128, (cols // pl.cdiv(cols, target_cols)) // 128 * 128)
    else:
        # ragged H*W: keep bc large so only the final column block is masked
        bc = target_cols

    # ---- row (sublane) block: fill the tile-byte budget ----
    br = max(8, (tile_bytes // (bc * itemsize)) // 8 * 8)
    if rows <= br:
        br = rows                                   # full dim (legal)

    grid_r, grid_c = pl.cdiv(rows, br), pl.cdiv(cols, bc)

    # v7x megacore: guarantee at least one "parallel" axis has extent >= 2 so
    # both TensorCores get work; no cost on large shapes, ~2x on medium ones.
    if grid_r == 1 and grid_c == 1 and rows >= 16:
        br = max(8, (rows // 2) // 8 * 8)
        grid_r = pl.cdiv(rows, br)
    grid = (grid_r, grid_c)

    # Fold mean/std once into per-row f32 scale/bias (kept f32 even for
    # bf16/fp16 activations; the kernel computes in f32 and casts at store).
    # std == 0 yields inf/nan exactly like the PyTorch reference.
    inv_std = 1.0 / std.astype(jnp.float32)
    neg_mean_over_std = -mean.astype(jnp.float32) * inv_std
    sb_c = jnp.stack([inv_std, neg_mean_over_std], axis=-1)   # (C, 2) f32
    sb_rows = jnp.tile(sb_c, (N, 1))                          # (N*C, 2) f32

    x2 = x.reshape(rows, cols)   # row-major NCHW -> free reshape

    cp_kwargs = dict(dimension_semantics=("parallel", "parallel"))
    if is_v7x:
        # 2 arrays x 2 buffers x ~4 MiB tiles + tiny scale/bias blocks,
        # comfortably under v7x's 64 MiB physical VMEM.
        cp_kwargs["vmem_limit_bytes"] = 40 << 20
    compiler_params = pltpu.CompilerParams(**cp_kwargs)

    call_kwargs = {}
    if donate_input:
        # x2 is call-arg index 1 (after sb_rows); aliasing avoids allocating a
        # second full-size HBM output buffer when x is no longer needed.
        call_kwargs["input_output_aliases"] = {1: 0}

    out2 = pl.pallas_call(
        _bn_kernel,
        out_shape=jax.ShapeDtypeStruct((rows, cols), x.dtype),
        grid=grid,
        in_specs=[
            pl.BlockSpec((br, 2), lambda i, j: (i, 0)),    # one tiny DMA per row-tile
            pl.BlockSpec((br, bc), lambda i, j: (i, j)),
        ],
        out_specs=pl.BlockSpec((br, bc), lambda i, j: (i, j)),
        compiler_params=compiler_params,
        **call_kwargs,
    )(sb_rows, x2)

    return out2.reshape(N, C, H, W)


if __name__ == "__main__":
    key = jax.random.PRNGKey(0)

    # --- Test 1: f32, shapes implied by the module (grid = (1,1)) ---
    N, C, H, W = 2, 4, 16, 16
    x = jax.random.normal(key, (N, C, H, W), dtype=jnp.float32)
    mean = jnp.array([0.485, 0.456, 0.406, 0.5], dtype=jnp.float32)
    std = jnp.array([0.229, 0.224, 0.225, 0.25], dtype=jnp.float32)

    out = jax.block_until_ready(batch_normalize(x, mean, std))
    ref = (x - mean[None, :, None, None]) / std[None, :, None, None]
    assert jnp.allclose(out, ref, atol=1e-5, rtol=1e-5), "f32 mismatch"

    # --- Test 2: ragged H*W (56*56 not a multiple of 128) + rows % 8 != 0 ---
    k2 = jax.random.PRNGKey(1)
    x2 = jax.random.normal(k2, (2, 3, 56, 56), dtype=jnp.float32)
    mean3 = jnp.array([0.485, 0.456, 0.406], dtype=jnp.float32)
    std3 = jnp.array([0.229, 0.224, 0.225], dtype=jnp.float32)
    out2 = jax.block_until_ready(batch_normalize(x2, mean3, std3))
    ref2 = (x2 - mean3[None, :, None, None]) / std3[None, :, None, None]
    assert jnp.allclose(out2, ref2, atol=1e-5, rtol=1e-5), "ragged mismatch"

    # --- Test 3: bf16 activations (f32 compute inside, cast at store) ---
    x3 = x.astype(jnp.bfloat16)
    out3 = jax.block_until_ready(batch_normalize(x3, mean, std))
    ref3 = (x3.astype(jnp.float32) - mean[None, :, None, None]) / std[None, :, None, None]
    assert jnp.allclose(out3.astype(jnp.float32), ref3, atol=2e-2, rtol=2e-2), "bf16 mismatch"

    print("KERNEL_OK")
</pallas_src>

<mosaic_0001>
module attributes {stable_mosaic.version = 11 : i64} {
  func.func @_bn_kernel(%arg0: i32, %arg1: i32, %arg2: memref<8x2xf32, #tpu.memory_space<vmem>>, %arg3: memref<8x256xf32, #tpu.memory_space<vmem>>, %arg4: memref<8x256xf32, #tpu.memory_space<vmem>>) attributes {dimension_semantics = [#tpu.dimension_semantics<parallel>, #tpu.dimension_semantics<parallel>], iteration_bounds = array<i64: 1, 1>, scalar_prefetch = 0 : i64, scratch_operands = 0 : i64, tpu.core_type = #tpu.core_type<tc>, window_params = [{transform_indices = @transform_0, window_bounds = array<i64: 8, 2>}, {transform_indices = @transform_1, window_bounds = array<i64: 8, 256>}, {transform_indices = @transform_2, window_bounds = array<i64: 8, 256>}]} {
    %c0 = arith.constant 0 : index
    %c0_0 = arith.constant 0 : index
    %0 = vector.load %arg2[%c0, %c0_0] : memref<8x2xf32, #tpu.memory_space<vmem>>, vector<8x2xf32>
    %1 = vector.extract_strided_slice %0 {offsets = [0, 0], sizes = [8, 1], strides = [1, 1]} : vector<8x2xf32> to vector<8x1xf32>
    %2 = vector.extract_strided_slice %0 {offsets = [0, 1], sizes = [8, 1], strides = [1, 1]} : vector<8x2xf32> to vector<8x1xf32>
    %c0_1 = arith.constant 0 : index
    %c0_2 = arith.constant 0 : index
    %3 = vector.load %arg3[%c0_1, %c0_2] : memref<8x256xf32, #tpu.memory_space<vmem>>, vector<8x256xf32>
    %4 = vector.broadcast %1 : vector<8x1xf32> to vector<8x256xf32>
    %5 = arith.mulf %3, %4 : vector<8x256xf32>
    %6 = vector.broadcast %2 : vector<8x1xf32> to vector<8x256xf32>
    %7 = arith.addf %5, %6 : vector<8x256xf32>
    %c0_3 = arith.constant 0 : index
    %c0_4 = arith.constant 0 : index
    %8 = vector.load %arg4[%c0_3, %c0_4] : memref<8x256xf32, #tpu.memory_space<vmem>>, vector<8x256xf32>
    tpu.vector_store %arg4[%c0_3, %c0_4], %7 {strides = array<i32>} : memref<8x256xf32, #tpu.memory_space<vmem>>, vector<8x256xf32>,
    return
  }
  func.func @transform_0(%arg0: i32, %arg1: i32) -> (i32, i32) {
    %c0_i32 = arith.constant 0 : i32
    %c0_i32_0 = arith.constant 0 : i32
    return %arg0, %c0_i32 : i32, i32
  }
  func.func @transform_1(%arg0: i32, %arg1: i32) -> (i32, i32) {
    %c0_i32 = arith.constant 0 : i32
    return %arg0, %arg1 : i32, i32
  }
  func.func @transform_2(%arg0: i32, %arg1: i32) -> (i32, i32) {
    %c0_i32 = arith.constant 0 : i32
    return %arg0, %arg1 : i32, i32
  }
}

</mosaic_0001>

<llo_original>
// kernel: tpu_custom_call.1
$region0: #{tpu_custom_call.1}
  #allocation0 [shape = 'u32[]', space=smem, size = 0x4, offset = 0x4, fixed_abs, tag = 'smem constant byte address 0x4 - core index']
  #allocation1 [shape = 'u32[144,128]{1,0:T(1,128)}', space=vmem, size = 0x12000, scoped, tag = 'internal scratch']
  %s0 = inlined_call_operand.vmem [shape: f32[8,2], index: 0, kind: input, shape index: {}]
  %s1 = inlined_call_operand.hbm [shape: f32[8,256], index: 1, kind: input, shape index: {}]
  %s2 = inlined_call_operand.hbm [shape: f32[8,256], index: 2, kind: output, shape index: {}]
  %s3 = sld [smem:[#allocation0]]
  $region22: #{tpu_custom_call.1} parent=0
    _
  %s5 = ssub.s32 1, %s3
  %s6 = scalar_select 0, %s5, %s3
  $region1: #{tpu_custom_call.1} parent=0
    #allocation2 [shape = 'u8[8192]{0}', space=vmem, size = 0x2000, scoped, tag = 'input window, operand 1, single buffered']
    #allocation3 [shape = 's32[1]{0}', space=sflag, size = 0x4, scoped, tag = 'scoped memory for tpu_custom_call.1']
    #allocation4 [shape = 's32[1]{0}', space=sflag, size = 0x4, scoped, tag = 'scoped memory for tpu_custom_call.1']
    #allocation5 [shape = 'u8[8192]{0}', space=vmem, size = 0x2000, scoped, tag = 'output window, operand 0, single buffered']
    %7 = vsyncpa [#allocation3], 0
    %8 = vsyncpa [#allocation4], 0
    // Predicated region
    $region2: #{tpu_custom_call.1} parent=1 // pred_check
      _
    $region3: #{tpu_custom_call.1} parent=1 // pred_check_branch
      %10 = sbr.rel (0) target = $region5
    $region4: #{tpu_custom_call.1} parent=1 // pred_region
      _
    $region5: #{tpu_custom_call.1} parent=1 // pred_fallthru
      _
    // Predicated region
    $region6: #{tpu_custom_call.1} parent=1 // pred_check
      _
    $region7: #{tpu_custom_call.1} parent=1 // pred_check_branch
      %12 = sbr.rel (0) target = $region9
    $region8: #{tpu_custom_call.1} parent=1 // pred_region
      %s14 = ssub.s32 256, 256
      %15 = vsyncadd [#allocation3], %s14
      %s17 = sshll.u32 [#allocation2], 4
      %s18 = int_to_ptr.vmem [resolvable:$true] %s17
      %20 = dma.hbm_to_vmem [thread:$0]  %s1, 256, %s18, [#allocation3]
    $region9: #{tpu_custom_call.1} parent=1 // pred_fallthru
      _
    // Predicated region
    $region10: #{tpu_custom_call.1} parent=1 // pred_check
      _
    $region11: #{tpu_custom_call.1} parent=1 // pred_check_branch
      %22 = sbr.rel (0) target = $region13
    $region12: #{tpu_custom_call.1} parent=1 // pred_region
      %23 = dma.done [#allocation3], 256
    $region13: #{tpu_custom_call.1} parent=1 // pred_fallthru
      _
    %v24 = vld [vmem:[%s0] sm:$0xff]
    %v25 = vld [vmem:[#allocation2] sm:$0xff]
    %v26 = vld [vmem:[#allocation2 + $0x8] sm:$0xff]
    %28 = vset.pattern.permute.xlu0 0
    %29 = vperm.xlu0 %28, %v24
    %v30 = vpop.permute.xlu0 %29
    %v32 = vmul.f32 %v25, %v30
    %v33 = vmul.f32 %v26, %v30
    %34 = vset.pattern.permute.xlu0 1
    %35 = vperm.xlu0 %34, %v24
    %v36 = vpop.permute.xlu0 %35
    %v38 = vadd.f32 %v32, %v36
    %v39 = vadd.f32 %v33, %v36
    %40 = vst [vmem:[#allocation5] sm:$0xff] %v38
    %41 = vst [vmem:[#allocation5 + $0x8] sm:$0xff] %v39
    // Predicated region
    $region14: #{tpu_custom_call.1} parent=1 // pred_check
      _
    $region15: #{tpu_custom_call.1} parent=1 // pred_check_branch
      %43 = sbr.rel (0) target = $region17
    $region16: #{tpu_custom_call.1} parent=1 // pred_region
      %s45 = ssub.s32 256, 256
      %46 = vsyncadd [#allocation4], %s45
      %s48 = sshll.u32 [#allocation5], 4
      %s49 = int_to_ptr.vmem [resolvable:$true] %s48
      %51 = dma.vmem_to_hbm [thread:$0]  %s49, 256, %s2, [#allocation4]
    $region17: #{tpu_custom_call.1} parent=1 // pred_fallthru
      _
    // Predicated region
    $region18: #{tpu_custom_call.1} parent=1 // pred_check
      _
    $region19: #{tpu_custom_call.1} parent=1 // pred_check_branch
      %53 = sbr.rel (0) target = $region21
    $region20: #{tpu_custom_call.1} parent=1 // pred_region
      %54 = dma.done [#allocation4], 256
    $region21: #{tpu_custom_call.1} parent=1 // pred_fallthru
      _
    %55 = vsyncpa [#allocation3], 1
    %56 = vsyncpa [#allocation4], 1

</llo_original>
